<compile_context>
chip_gen: v6e
topology: v6e:2x2x1
jax: 0.10.0
libtpu: 0.0.40
codegen_flags: <defaults>
</compile_context>

<pallas_src>
import jax
import jax.numpy as jnp
from jax.experimental import pallas as pl
from jax.experimental.pallas import tpu as pltpu


def time2vec_kernel(t_ref, w_ref, b_ref, o_ref):
    t = t_ref[...]                      # (1, TILE_N)   time samples on lanes
    w = w_ref[...]                      # (Dp, 1)       fused Linear weights
    b = b_ref[...]                      # (Dp, 1)       fused Linear biases
    z = w * t + b                       # broadcast FMA -> (Dp, TILE_N)
    # Rows 1..D-1 (and any padded rows) want sin; store the whole block then
    # overwrite row 0 with the unactivated projection.  No iota/compare/select.
    o_ref[...] = jnp.sin(z)
    o_ref[0:1, :] = z[0:1, :]           # row 0: unactivated time projection


def _round_up(x: int, m: int) -> int:
    return ((x + m - 1) // m) * m


def _cdiv(a: int, b: int) -> int:
    return (a + b - 1) // b


def time2vec(t, w0, b0, w1, b1, *, tile_n=131072, transposed_output=False):
    """Time2Vec forward.

    t:  (N, 1) float32
    w0: (1, 1), b0: (1,)   -- nn.Linear(1, 1) params
    w1: (P, 1), b1: (P,)   -- nn.Linear(1, P) params
    Returns (N, 1 + P), or the lane-dense (1 + P, N) slab when
    `transposed_output=True` (lets a consumer fuse/absorb the transpose).
    """
    N = t.shape[0]
    P = w1.shape[0]
    D = 1 + P
    Dp = _round_up(D, 8)                # sublane-aligned feature dim
    dtype = t.dtype
    itemsize = jnp.dtype(dtype).itemsize

    # Fuse both Linear(1, ·) layers into one (Dp, 1) weight/bias column
    # (feature dim on sublanes, time samples on lanes inside the kernel).
    # Padded rows are zero and are sliced off after the call.
    W = jnp.zeros((Dp, 1), dtype=dtype)
    W = W.at[0:1, :].set(w0.reshape(1, 1)).at[1:D, :].set(w1.reshape(P, 1))
    B = jnp.zeros((Dp, 1), dtype=dtype)
    B = B.at[0:1, :].set(b0.reshape(1, 1)).at[1:D, :].set(b1.reshape(P, 1))

    # ---- Tile sizing -------------------------------------------------------
    # Per lane: double-buffered output rows + double-buffered input row.
    # Keep the total a few MiB under v5e's 16 MiB scoped-VMEM default so the
    # same tile works on v5e/v6e/v7x without raising vmem_limit_bytes.
    bytes_per_lane = 2 * (Dp + 1) * itemsize
    vmem_budget = 14 << 20
    max_tile = max(128, (vmem_budget // bytes_per_lane) // 128 * 128)
    tile = max(128, min(tile_n, max_tile))

    num_tiles = _cdiv(N, tile)
    # Give both v7x TensorCores work when there is enough of it.
    if num_tiles == 1 and N > 4096:
        num_tiles = 2
    # Rebalance: bounds lane-padding waste to <128 lanes per tile.
    tile = _round_up(_cdiv(N, num_tiles), 128)
    n_pad = num_tiles * tile
    grid = (num_tiles,)

    # Lane-dense input: (N, 1) -> (1, N) padded to num_tiles * tile lanes.
    t_lane = jnp.pad(t.reshape(1, N), ((0, 0), (0, n_pad - N)))

    out_t = pl.pallas_call(
        time2vec_kernel,
        out_shape=jax.ShapeDtypeStruct((Dp, n_pad), dtype),
        grid=grid,
        in_specs=[
            pl.BlockSpec((1, tile), lambda i: (0, i)),      # t tile (lane-dense)
            pl.BlockSpec((Dp, 1), lambda i: (0, 0)),        # W resident
            pl.BlockSpec((Dp, 1), lambda i: (0, 0)),        # B resident
        ],
        out_specs=pl.BlockSpec((Dp, tile), lambda i: (0, i)),
        compiler_params=pltpu.CompilerParams(
            dimension_semantics=("parallel",),              # megacore on v7x
        ),
    )(t_lane, W, B)

    out_t = out_t[:D, :N]                                   # drop D/lane padding
    if transposed_output:
        return out_t                                        # (D, N) lane-dense
    # PyTorch layout (N, D).  For mem-bound sizes, prefer transposed_output=True
    # and fuse this transpose into the consumer to avoid ~3x HBM traffic.
    return out_t.T


def _reference(t, w0, b0, w1, b1):
    ref_unact = t @ w0.T + b0                # (N, 1)
    ref_act = jnp.sin(t @ w1.T + b1)         # (N, P)
    return jnp.concatenate([ref_unact, ref_act], axis=-1)


if __name__ == "__main__":
    key = jax.random.PRNGKey(0)
    k_t, k_w0, k_b0, k_w1, k_b1, k_t2, k_t3 = jax.random.split(key, 7)

    N = 8                 # batch of time samples
    projection_dims = 7   # -> d_out = 8

    t = jax.random.normal(k_t, (N, 1), dtype=jnp.float32)

    # nn.Linear default init: U(-1/sqrt(fan_in), 1/sqrt(fan_in)), fan_in=1 -> U(-1, 1).
    w0 = jax.random.uniform(k_w0, (1, 1), minval=-1.0, maxval=1.0, dtype=jnp.float32)
    b0 = jax.random.uniform(k_b0, (1,), minval=-1.0, maxval=1.0, dtype=jnp.float32)
    w1 = jax.random.uniform(k_w1, (projection_dims, 1), minval=-1.0, maxval=1.0,
                            dtype=jnp.float32)
    b1 = jax.random.uniform(k_b1, (projection_dims,), minval=-1.0, maxval=1.0,
                            dtype=jnp.float32)

    out = jax.block_until_ready(time2vec(t, w0, b0, w1, b1))
    ref = _reference(t, w0, b0, w1, b1)
    assert out.shape == (N, 1 + projection_dims)
    assert jnp.allclose(out, ref, atol=1e-5), "mismatch vs reference (small N)"

    # Multi-tile grid path + partial-lane padding (N not a multiple of 128),
    # with a forced small tile so the grid has several steps.
    N2 = 300
    t2 = jax.random.normal(k_t2, (N2, 1), dtype=jnp.float32)
    out2 = jax.block_until_ready(time2vec(t2, w0, b0, w1, b1, tile_n=128))
    ref2 = _reference(t2, w0, b0, w1, b1)
    assert out2.shape == (N2, 1 + projection_dims)
    assert jnp.allclose(out2, ref2, atol=1e-5), "mismatch vs reference (tiled N)"

    # Non-multiple-of-8 feature dim (D padded to sublanes) + lane-dense output
    # path (no wrapper transpose) + forced 2-tile split for modest N.
    P3 = 5                                                  # D = 6 -> Dp = 8
    w3 = jax.random.uniform(k_w1, (P3, 1), minval=-1.0, maxval=1.0, dtype=jnp.float32)
    b3 = jax.random.uniform(k_b1, (P3,), minval=-1.0, maxval=1.0, dtype=jnp.float32)
    N3 = 5000
    t3 = jax.random.normal(k_t3, (N3, 1), dtype=jnp.float32)
    out3_t = jax.block_until_ready(
        time2vec(t3, w0, b0, w3, b3, transposed_output=True))
    ref3 = _reference(t3, w0, b0, w3, b3)
    assert out3_t.shape == (1 + P3, N3)
    assert jnp.allclose(out3_t.T, ref3, atol=1e-5), "mismatch vs reference (padded D)"

    print("KERNEL_OK")
</pallas_src>

<mosaic_0001>
module attributes {stable_mosaic.version = 11 : i64} {
  func.func @time2vec_kernel(%arg0: i32, %arg1: memref<1x128xf32, #tpu.memory_space<vmem>>, %arg2: memref<8x1xf32, #tpu.memory_space<vmem>>, %arg3: memref<8x1xf32, #tpu.memory_space<vmem>>, %arg4: memref<8x128xf32, #tpu.memory_space<vmem>>) attributes {dimension_semantics = [#tpu.dimension_semantics<parallel>], iteration_bounds = array<i64: 1>, scalar_prefetch = 0 : i64, scratch_operands = 0 : i64, tpu.core_type = #tpu.core_type<tc>, window_params = [{transform_indices = @transform_0, window_bounds = array<i64: 1, 128>}, {pipeline_mode = #tpu.pipeline_mode<synchronous>, transform_indices = @transform_1, window_bounds = array<i64: 8, 1>}, {pipeline_mode = #tpu.pipeline_mode<synchronous>, transform_indices = @transform_2, window_bounds = array<i64: 8, 1>}, {transform_indices = @transform_3, window_bounds = array<i64: 8, 128>}]} {
    %c0 = arith.constant 0 : index
    %c0_0 = arith.constant 0 : index
    %0 = vector.load %arg1[%c0, %c0_0] : memref<1x128xf32, #tpu.memory_space<vmem>>, vector<1x128xf32>
    %c0_1 = arith.constant 0 : index
    %c0_2 = arith.constant 0 : index
    %1 = vector.load %arg2[%c0_1, %c0_2] : memref<8x1xf32, #tpu.memory_space<vmem>>, vector<8x1xf32>
    %c0_3 = arith.constant 0 : index
    %c0_4 = arith.constant 0 : index
    %2 = vector.load %arg3[%c0_3, %c0_4] : memref<8x1xf32, #tpu.memory_space<vmem>>, vector<8x1xf32>
    %3 = vector.broadcast %1 : vector<8x1xf32> to vector<8x128xf32>
    %4 = vector.broadcast %0 : vector<1x128xf32> to vector<8x128xf32>
    %5 = arith.mulf %3, %4 : vector<8x128xf32>
    %6 = vector.broadcast %2 : vector<8x1xf32> to vector<8x128xf32>
    %7 = arith.addf %5, %6 : vector<8x128xf32>
    %8 = math.sin %7 : vector<8x128xf32>
    %c0_5 = arith.constant 0 : index
    %c0_6 = arith.constant 0 : index
    %9 = vector.load %arg4[%c0_5, %c0_6] : memref<8x128xf32, #tpu.memory_space<vmem>>, vector<8x128xf32>
    tpu.vector_store %arg4[%c0_5, %c0_6], %8 {strides = array<i32>} : memref<8x128xf32, #tpu.memory_space<vmem>>, vector<8x128xf32>,
    %10 = vector.extract_strided_slice %7 {offsets = [0, 0], sizes = [1, 128], strides = [1, 1]} : vector<8x128xf32> to vector<1x128xf32>
    %c0_7 = arith.constant 0 : index
    %c0_8 = arith.constant 0 : index
    %11 = vector.load %arg4[%c0_7, %c0_8] : memref<8x128xf32, #tpu.memory_space<vmem>>, vector<1x128xf32>
    tpu.vector_store %arg4[%c0_7, %c0_8], %10 {strides = array<i32>} : memref<8x128xf32, #tpu.memory_space<vmem>>, vector<1x128xf32>,
    return
  }
  func.func @transform_0(%arg0: i32) -> (i32, i32) {
    %c0_i32 = arith.constant 0 : i32
    %c0_i32_0 = arith.constant 0 : i32
    return %c0_i32, %arg0 : i32, i32
  }
  func.func @transform_1(%arg0: i32) -> (i32, i32) {
    %c0_i32 = arith.constant 0 : i32
    %c0_i32_0 = arith.constant 0 : i32
    %c0_i32_1 = arith.constant 0 : i32
    return %c0_i32, %c0_i32_0 : i32, i32
  }
  func.func @transform_2(%arg0: i32) -> (i32, i32) {
    %c0_i32 = arith.constant 0 : i32
    %c0_i32_0 = arith.constant 0 : i32
    %c0_i32_1 = arith.constant 0 : i32
    return %c0_i32, %c0_i32_0 : i32, i32
  }
  func.func @transform_3(%arg0: i32) -> (i32, i32) {
    %c0_i32 = arith.constant 0 : i32
    %c0_i32_0 = arith.constant 0 : i32
    return %c0_i32, %arg0 : i32, i32
  }
}

</mosaic_0001>

<llo_original>
// kernel: tpu_custom_call.1
$region0: #{tpu_custom_call.1}
  #allocation0 [shape = 'u32[]', space=smem, size = 0x4, offset = 0x4, fixed_abs, tag = 'smem constant byte address 0x4 - core index']
  #allocation1 [shape = 'u32[144,128]{1,0:T(1,128)}', space=vmem, size = 0x12000, scoped, tag = 'internal scratch']
  %s0 = inlined_call_operand.vmem [shape: f32[1,128], index: 0, kind: input, shape index: {}]
  %s1 = inlined_call_operand.vmem [shape: f32[8,1], index: 1, kind: input, shape index: {}]
  %s2 = inlined_call_operand.vmem [shape: f32[8,1], index: 2, kind: input, shape index: {}]
  %s3 = inlined_call_operand.hbm [shape: f32[8,128], index: 3, kind: output, shape index: {}]
  %s4 = sld [smem:[#allocation0]]
  $region22: #{tpu_custom_call.1} parent=0
    _
  %s6 = ssub.s32 1, %s4
  %s7 = scalar_select 0, %s6, %s4
  $region1: #{tpu_custom_call.1} parent=0
    #allocation2 [shape = 'u8[4096]{0}', space=vmem, size = 0x1000, scoped, tag = 'output window, operand 0, single buffered']
    #allocation3 [shape = 's32[1]{0}', space=sflag, size = 0x4, scoped, tag = 'scoped memory for tpu_custom_call.1']
    %8 = vsyncpa [#allocation3], 0
    // Predicated region
    $region2: #{tpu_custom_call.1} parent=1 // pred_check
      _
    $region3: #{tpu_custom_call.1} parent=1 // pred_check_branch
      %10 = sbr.rel (0) target = $region5
    $region4: #{tpu_custom_call.1} parent=1 // pred_region
      _
    $region5: #{tpu_custom_call.1} parent=1 // pred_fallthru
      _
    // Predicated region
    $region6: #{tpu_custom_call.1} parent=1 // pred_check
      _
    $region7: #{tpu_custom_call.1} parent=1 // pred_check_branch
      %12 = sbr.rel (0) target = $region9
    $region8: #{tpu_custom_call.1} parent=1 // pred_region
      _
    $region9: #{tpu_custom_call.1} parent=1 // pred_fallthru
      _
    // Predicated region
    $region10: #{tpu_custom_call.1} parent=1 // pred_check
      _
    $region11: #{tpu_custom_call.1} parent=1 // pred_check_branch
      %14 = sbr.rel (0) target = $region13
    $region12: #{tpu_custom_call.1} parent=1 // pred_region
      _
    $region13: #{tpu_custom_call.1} parent=1 // pred_fallthru
      _
    %v15 = vld [vmem:[%s0] sm:$0x1]
    %v16 = vld [vmem:[%s1] sm:$0xff]
    %v17 = vld [vmem:[%s2] sm:$0xff]
    %19 = vset.pattern.permute.xlu0 0
    %20 = vperm.xlu0 %19, %v16
    %v21 = vpop.permute.xlu0 %20
    %v24 = vlaneseq
    %v25 = vshrl.u32 %v24, 7
    %v26 = vsub.s32 0, %v25
    %v27 = vrot.slane %v15, %v26
    %v29 = vmul.f32 %v21, %v27
    %31 = vset.pattern.permute.xlu0 0
    %32 = vperm.xlu0 %31, %v17
    %v33 = vpop.permute.xlu0 %32
    %v35 = vadd.f32 %v29, %v33
    %v36 = vand.u32 2147483647, %v35
    %vm37 = vcmp.le.f32.partialorder %v36, 0.7853982
    %vm38 = vcmp.lt.s32.totalorder %v35, 0
    %v39 = vand.u32 %v35, 2139095040
    %v40 = vshrl.u32 %v39, 23
    %v41 = vsub.s32 %v40, 127
    %v42 = vand.u32 2147483647, %v35
    %v43 = vand.u32 %v42, 8388607
    %v44 = vor.u32 %v43, 8388608
    %v45 = vsub.s32 0, %v44
    %v46 = vadd.s32 %v41, 1
    %vm47 = vcmp.gt.s32.totalorder %v46, 0
    %v48 = vsel %vm47, %v46, 0
    %v49 = vshrl.u32 %v48, 5
    %v50 = vand.u32 %v48, 31
    %v51 = vsub.s32 32, %v50
    %v52 = vshrl.u32 683565275, %v51
    %v53 = vshll.u32 683565275, %v50
    %v54 = vshrl.u32 2475754826, %v51
    %v55 = vor.u32 %v53, %v54
    %v56 = vshll.u32 2475754826, %v50
    %v57 = vshrl.u32 2131351028, %v51
    %v58 = vor.u32 %v56, %v57
    %v59 = vshll.u32 2131351028, %v50
    %v60 = vshrl.u32 2102212464, %v51
    %v61 = vor.u32 %v59, %v60
    %v62 = vshll.u32 2102212464, %v50
    %v63 = vshrl.u32 920167782, %v51
    %v64 = vor.u32 %v62, %v63
    %v65 = vshll.u32 920167782, %v50
    %v66 = vshrl.u32 1326507024, %v51
    %v67 = vor.u32 %v65, %v66
    %vm68 = vcmp.lt.s32.totalorder %v49, 1
    %vm69 = vcmp.lt.s32.totalorder %v49, 2
    %vm70 = vcmp.lt.s32.totalorder %v49, 3
    %vm71 = vcmp.lt.s32.totalorder %v49, 4
    %v72 = vsel %vm68, %v52, %v55
    %v73 = vsel %vm71, %v61, 2102212464
    %v74 = vsel %vm70, %v58, %v73
    %v75 = vsel %vm69, %v72, %v74
    %v76 = vsel %vm68, %v55, %v58
    %v77 = vsel %vm71, %v64, 920167782
    %v78 = vsel %vm70, %v61, %v77
    %v79 = vsel %vm69, %v76, %v78
    %v80 = vsel %vm68, %v58, %v61
    %v81 = vsel %vm71, %v67, 1326507024
    %v82 = vsel %vm70, %v64, %v81
    %v83 = vsel %vm69, %v80, %v82
    %v84 = vshll.u32 %v44, 8
    %v85 = vmul.u32.u64.compose %v84, %v83
    %v86 = vextract.low.u32 %v85
    %v87 = vextract.high.u32 %v85
    %v88 = vmul.u32.u64.compose %v84, %v79
    %v89 = vextract.low.u32 %v88
    %v90 = vextract.high.u32 %v88
    %v91 = vmul.u32 %v84, %v75
    %v92 = vadd.s32 %v87, %v89
    %vm93 = vc.u32 %v87, %v89
    %v94 = vadd.s32 %v90, 1
    %v95 = vsel %vm93, %v94, %v90
    %v96 = vadd.s32 %v91, %v95
    %v97 = vadd.s32 %v96, 536870912
    %v98 = vshrl.u32 %v97, 30
    %v99 = vshll.u32 %v98, 30
    %v100 = vsub.s32 %v96, %v99
    %vm101 = vcmp.lt.s32.totalorder %v100, 0
    %v102 = vsub.s32 0, %v100
    %v103 = vsel %vm101, %v102, %v100
    %v104 = vclz %v103
    %v105 = vsub.s32 %v104, 2
    %vm106 = vcmp.gt.s32.totalorder 0, %v105
    %v107 = vsel %vm106, 0, %v105
    %v108 = vsub.s32 32, %v107
    %v109 = vshll.u32 %v100, %v107
    %v110 = vshrl.u32 %v92, %v108
    %v111 = vor.u32 %v109, %v110
    %v112 = vsub.s32 4294967266, %v107
    %v113 = vadd.s32 %v112, 127
    %v114 = vshll.u32 %v113, 23
    %v115 = vor.u32 4788187, %v114
    %v116 = vand.u32 2147483647, %v115
    %v118 = vcvt.s32.f32 %v111
    %v119 = vmul.f32 %v118, %v116
    %v120 = vxor.u32 %v119, 2147483648
    %v121 = vsel %vm38, %v120, %v119
    %v122 = vsub.s32 4, %v98
    %v123 = vsel %vm38, %v122, %v98
    %v124 = vsel %vm37, %v35, %v121
    %v125 = vsel %vm37, 0, %v123
    %v126 = vcosq.f32.pop %v124
    %v127 = vsinq.f32.pop %v124
    %vm128 = vweird.f32 %v35
    %v129 = vadd.s32 %v125, 3
    %v130 = vand.u32 %v129, 3
    %vm131 = vcmp.lt.s32.totalorder %v130, 2
    %vm132 = vcmp.eq.s32.totalorder %v130, 0
    %v133 = vxor.u32 %v127, 2147483648
    %v134 = vsel %vm132, %v126, %v133
    %vm135 = vcmp.eq.s32.totalorder %v130, 2
    %v136 = vxor.u32 %v126, 2147483648
    %v137 = vsel %vm135, %v136, %v127
    %v138 = vsel %vm131, %v134, %v137
    %v139 = vsel %vm128, nan, %v138
    %140 = vst [vmem:[#allocation2] sm:$0xff] %v139
    %141 = vst [vmem:[#allocation2] sm:$0x1] %v35
    // Predicated region
    $region14: #{tpu_custom_call.1} parent=1 // pred_check
      _
    $region15: #{tpu_custom_call.1} parent=1 // pred_check_branch
      %143 = sbr.rel (0) target = $region17
    $region16: #{tpu_custom_call.1} parent=1 // pred_region
      %s145 = ssub.s32 128, 128
      %146 = vsyncadd [#allocation3], %s145
      %s148 = sshll.u32 [#allocation2], 4
      %s149 = int_to_ptr.vmem [resolvable:$true] %s148
      %151 = dma.vmem_to_hbm [thread:$0]  %s149, 128, %s3, [#allocation3]
    $region17: #{tpu_custom_call.1} parent=1 // pred_fallthru
      _
    // Predicated region
    $region18: #{tpu_custom_call.1} parent=1 // pred_check
      _
    $region19: #{tpu_custom_call.1} parent=1 // pred_check_branch
      %153 = sbr.rel (0) target = $region21
    $region20: #{tpu_custom_call.1} parent=1 // pred_region
      %154 = dma.done [#allocation3], 128
    $region21: #{tpu_custom_call.1} parent=1 // pred_fallthru
      _
    %155 = vsyncpa [#allocation3], 1

</llo_original>
